<compile_context>
chip_gen: v7x
topology: tpu7x:2x2x1
jax: 0.10.0
libtpu: 0.0.40
codegen_flags: <defaults>
</compile_context>

<pallas_src>
import jax
import jax.numpy as jnp
from jax.experimental import pallas as pl
from jax.experimental.pallas import tpu as pltpu

FEAT_DIM = 512        # LayerNorm(512) in the module
HIDDEN = 128          # stand-in text-encoder hidden size
VOCAB = 100
VOCAB_PAD = 128       # pad vocab to a full lane width for the one-hot matmul
LN_EPS = 1e-5         # torch.nn.LayerNorm default
MAX_TILE_N = 512      # amortizes grid-step overhead; ~7 MiB VMEM dbl-buffered


def _round_up(x, m):
    return ((x + m - 1) // m) * m


def _layernorm(x, gamma, beta):
    # Single-pass variance: mean(x*x) - mu*mu (one fewer XLU reduction per row).
    mu = jnp.mean(x, axis=-1, keepdims=True)
    msq = jnp.mean(x * x, axis=-1, keepdims=True)
    var = jnp.maximum(msq - mu * mu, 0.0)
    y = (x - mu) * jax.lax.rsqrt(var + LN_EPS)
    return y * gamma + beta


# ---------------------------------------------------------------------------
# Fused kernel (per N-row tile):
#   ids   : (T, S)          int32   token ids (mask derived in-kernel)
#   vis   : (T, 512)        f32     visual features
#   embed : (128, H)        f32     padded embedding table      (resident)
#   w     : (H, 512)        f32     text projection weight      (resident)
#   vecs  : (8, 512)        f32     [proj_b, tg, tb, vg, vb, 0..] (resident)
# outputs:
#   text_o: (T, 512)        f32
#   vis_o : (T, 512)        f32
# ---------------------------------------------------------------------------
def encoder_kernel(ids_ref, vis_ref, embed_ref, w_ref, vecs_ref,
                   text_out_ref, vis_out_ref):
    ids = ids_ref[...]                                   # (T, S) int32
    tile_n, seq_len = ids.shape

    # In-kernel gather via weighted one-hot counts:
    #   counts[n, v] = #{s : ids[n, s] == v and ids[n, s] != 0}
    #   sum_s mask*emb[ids]  ==  counts @ embed
    vocab_iota = jax.lax.broadcasted_iota(jnp.int32, (tile_n, VOCAB_PAD), 1)
    counts_i = jnp.zeros((tile_n, VOCAB_PAD), jnp.int32)
    for s in range(seq_len):                             # static, S is small
        col = ids[:, s:s + 1]                            # (T, 1)
        hit = jnp.logical_and(vocab_iota == col, col != 0)
        counts_i = counts_i + hit.astype(jnp.int32)
    counts = counts_i.astype(jnp.float32)                # single cast

    denom = jnp.sum(counts, axis=-1, keepdims=True)      # (T, 1) #non-pad tokens
    inv_denom = pl.reciprocal(jnp.maximum(denom, 1.0), approx=True)

    # resident parameter vectors (static sublane slices of one vreg block)
    vecs = vecs_ref[...]                                 # (8, 512)
    proj_b = vecs[0:1, :]
    tg, tb = vecs[1:2, :], vecs[2:3, :]
    vg, vb = vecs[3:4, :], vecs[4:5, :]

    # masked mean pool (MXU) -> projection (MXU) -> LayerNorm
    pooled = jnp.dot(counts, embed_ref[...],
                     preferred_element_type=jnp.float32) * inv_denom   # (T, H)
    proj = jnp.dot(pooled, w_ref[...],
                   preferred_element_type=jnp.float32) + proj_b        # (T, 512)
    text_out_ref[...] = _layernorm(proj, tg, tb).astype(text_out_ref.dtype)

    # visual branch: LayerNorm(512) on the same row tile
    x = vis_ref[...].astype(jnp.float32)
    vis_out_ref[...] = _layernorm(x, vg, vb).astype(vis_out_ref.dtype)


def init_params(key):
    k_emb, k_w = jax.random.split(key, 2)
    return {
        "embed": jax.random.normal(k_emb, (VOCAB, HIDDEN), jnp.float32) * 0.02,
        "proj_w": jax.random.normal(k_w, (HIDDEN, FEAT_DIM), jnp.float32) * 0.02,
        "proj_b": jnp.zeros((1, FEAT_DIM), jnp.float32),
        # nn.LayerNorm init: weight = 1, bias = 0
        "text_ln_g": jnp.ones((1, FEAT_DIM), jnp.float32),
        "text_ln_b": jnp.zeros((1, FEAT_DIM), jnp.float32),
        "vis_ln_g": jnp.ones((1, FEAT_DIM), jnp.float32),
        "vis_ln_b": jnp.zeros((1, FEAT_DIM), jnp.float32),
    }


def base_feature_encoder(input_ids, visual_feats, params):
    B, num_videos, num_frames, len_sent = input_ids.shape
    N = B * num_videos * num_frames

    ids = input_ids.reshape(N, len_sent).astype(jnp.int32)
    vf = visual_feats.reshape(N, FEAT_DIM).astype(jnp.float32)

    # Row tile: multiple of 8 (sublane), capped at MAX_TILE_N.
    tile_n = min(MAX_TILE_N, _round_up(N, 8))
    n_pad = _round_up(N, tile_n)
    if n_pad != N:
        ids = jnp.pad(ids, ((0, n_pad - N), (0, 0)))      # pad rows -> all-zero ids
        vf = jnp.pad(vf, ((0, n_pad - N), (0, 0)))

    embed_pad = jnp.pad(params["embed"],
                        ((0, VOCAB_PAD - VOCAB), (0, 0)))  # (128, H)

    # pack all (1, 512) parameter vectors into one lane-dense (8, 512) block
    vecs = jnp.concatenate(
        [params["proj_b"],
         params["text_ln_g"], params["text_ln_b"],
         params["vis_ln_g"], params["vis_ln_b"],
         jnp.zeros((3, FEAT_DIM), jnp.float32)], axis=0)  # (8, 512)

    grid = (n_pad // tile_n,)
    row_spec_ids = pl.BlockSpec((tile_n, len_sent), lambda i: (i, 0))
    row_spec_512 = pl.BlockSpec((tile_n, FEAT_DIM), lambda i: (i, 0))
    const_embed = pl.BlockSpec((VOCAB_PAD, HIDDEN), lambda i: (0, 0))
    const_w = pl.BlockSpec((HIDDEN, FEAT_DIM), lambda i: (0, 0))
    const_vecs = pl.BlockSpec((8, FEAT_DIM), lambda i: (0, 0))

    text, vis = pl.pallas_call(
        encoder_kernel,
        grid=grid,
        in_specs=[row_spec_ids, row_spec_512,
                  const_embed, const_w, const_vecs],
        out_specs=(row_spec_512, row_spec_512),
        out_shape=(jax.ShapeDtypeStruct((n_pad, FEAT_DIM), jnp.float32),
                   jax.ShapeDtypeStruct((n_pad, FEAT_DIM), jnp.float32)),
        compiler_params=pltpu.CompilerParams(
            dimension_semantics=("parallel",),
            vmem_limit_bytes=32 * 1024 * 1024,
        ),
    )(ids, vf, embed_pad, params["proj_w"], vecs)

    text_feats = text[:N].reshape(B, num_videos, num_frames, FEAT_DIM)
    visual_out = vis[:N].reshape(B, num_videos, num_frames, FEAT_DIM)
    return text_feats, visual_out


if __name__ == "__main__":
    key = jax.random.PRNGKey(0)
    k_params, k_ids, k_vis = jax.random.split(key, 3)

    B, num_videos, num_frames, len_sent = 2, 2, 2, 8
    params = init_params(k_params)

    input_ids = jax.random.randint(
        k_ids, (B, num_videos, num_frames, len_sent), 0, VOCAB, dtype=jnp.int32)
    visual_feats = jax.random.normal(
        k_vis, (B, num_videos, num_frames, FEAT_DIM), jnp.float32)

    text_feats, vis_feats = base_feature_encoder(input_ids, visual_feats, params)
    jax.block_until_ready((text_feats, vis_feats))

    assert text_feats.shape == (B, num_videos, num_frames, FEAT_DIM)
    assert vis_feats.shape == (B, num_videos, num_frames, FEAT_DIM)
    assert bool(jnp.all(jnp.isfinite(text_feats)))
    assert bool(jnp.all(jnp.isfinite(vis_feats)))
    print("KERNEL_OK")
</pallas_src>

<mosaic_0001>
module attributes {stable_mosaic.version = 11 : i64} {
  func.func @encoder_kernel(%arg0: i32, %arg1: memref<8x8xi32, #tpu.memory_space<vmem>>, %arg2: memref<8x512xf32, #tpu.memory_space<vmem>>, %arg3: memref<128x128xf32, #tpu.memory_space<vmem>>, %arg4: memref<128x512xf32, #tpu.memory_space<vmem>>, %arg5: memref<8x512xf32, #tpu.memory_space<vmem>>, %arg6: memref<8x512xf32, #tpu.memory_space<vmem>>, %arg7: memref<8x512xf32, #tpu.memory_space<vmem>>) attributes {dimension_semantics = [#tpu.dimension_semantics<parallel>], iteration_bounds = array<i64: 1>, scalar_prefetch = 0 : i64, scratch_operands = 0 : i64, tpu.core_type = #tpu.core_type<tc>, window_params = [{transform_indices = @transform_0, window_bounds = array<i64: 8, 8>}, {transform_indices = @transform_1, window_bounds = array<i64: 8, 512>}, {pipeline_mode = #tpu.pipeline_mode<synchronous>, transform_indices = @transform_2, window_bounds = array<i64: 128, 128>}, {pipeline_mode = #tpu.pipeline_mode<synchronous>, transform_indices = @transform_3, window_bounds = array<i64: 128, 512>}, {pipeline_mode = #tpu.pipeline_mode<synchronous>, transform_indices = @transform_4, window_bounds = array<i64: 8, 512>}, {transform_indices = @transform_5, window_bounds = array<i64: 8, 512>}, {transform_indices = @transform_6, window_bounds = array<i64: 8, 512>}]} {
    %c0 = arith.constant 0 : index
    %c0_0 = arith.constant 0 : index
    %0 = vector.load %arg1[%c0, %c0_0] : memref<8x8xi32, #tpu.memory_space<vmem>>, vector<8x8xi32>
    %1 = tpu.iota {dimensions = array<i32: 1>} : vector<8x128xi32>
    %c0_i32 = arith.constant 0 : i32
    %2 = vector.broadcast %c0_i32 : i32 to vector<8x128xi32>
    %3 = vector.extract_strided_slice %0 {offsets = [0, 0], sizes = [8, 1], strides = [1, 1]} : vector<8x8xi32> to vector<8x1xi32>
    %4 = vector.broadcast %3 : vector<8x1xi32> to vector<8x128xi32>
    %5 = arith.cmpi eq, %1, %4 : vector<8x128xi32>
    %c0_i32_1 = arith.constant 0 : i32
    %6 = vector.broadcast %c0_i32_1 : i32 to vector<8x1xi32>
    %7 = arith.cmpi ne, %3, %6 : vector<8x1xi32>
    %8 = vector.broadcast %7 : vector<8x1xi1> to vector<8x128xi1>
    %9 = arith.andi %5, %8 : vector<8x128xi1>
    %10 = arith.extui %9 : vector<8x128xi1> to vector<8x128xi32>
    %11 = arith.addi %2, %10 : vector<8x128xi32>
    %12 = vector.extract_strided_slice %0 {offsets = [0, 1], sizes = [8, 1], strides = [1, 1]} : vector<8x8xi32> to vector<8x1xi32>
    %13 = vector.broadcast %12 : vector<8x1xi32> to vector<8x128xi32>
    %14 = arith.cmpi eq, %1, %13 : vector<8x128xi32>
    %c0_i32_2 = arith.constant 0 : i32
    %15 = vector.broadcast %c0_i32_2 : i32 to vector<8x1xi32>
    %16 = arith.cmpi ne, %12, %15 : vector<8x1xi32>
    %17 = vector.broadcast %16 : vector<8x1xi1> to vector<8x128xi1>
    %18 = arith.andi %14, %17 : vector<8x128xi1>
    %19 = arith.extui %18 : vector<8x128xi1> to vector<8x128xi32>
    %20 = arith.addi %11, %19 : vector<8x128xi32>
    %21 = vector.extract_strided_slice %0 {offsets = [0, 2], sizes = [8, 1], strides = [1, 1]} : vector<8x8xi32> to vector<8x1xi32>
    %22 = vector.broadcast %21 : vector<8x1xi32> to vector<8x128xi32>
    %23 = arith.cmpi eq, %1, %22 : vector<8x128xi32>
    %c0_i32_3 = arith.constant 0 : i32
    %24 = vector.broadcast %c0_i32_3 : i32 to vector<8x1xi32>
    %25 = arith.cmpi ne, %21, %24 : vector<8x1xi32>
    %26 = vector.broadcast %25 : vector<8x1xi1> to vector<8x128xi1>
    %27 = arith.andi %23, %26 : vector<8x128xi1>
    %28 = arith.extui %27 : vector<8x128xi1> to vector<8x128xi32>
    %29 = arith.addi %20, %28 : vector<8x128xi32>
    %30 = vector.extract_strided_slice %0 {offsets = [0, 3], sizes = [8, 1], strides = [1, 1]} : vector<8x8xi32> to vector<8x1xi32>
    %31 = vector.broadcast %30 : vector<8x1xi32> to vector<8x128xi32>
    %32 = arith.cmpi eq, %1, %31 : vector<8x128xi32>
    %c0_i32_4 = arith.constant 0 : i32
    %33 = vector.broadcast %c0_i32_4 : i32 to vector<8x1xi32>
    %34 = arith.cmpi ne, %30, %33 : vector<8x1xi32>
    %35 = vector.broadcast %34 : vector<8x1xi1> to vector<8x128xi1>
    %36 = arith.andi %32, %35 : vector<8x128xi1>
    %37 = arith.extui %36 : vector<8x128xi1> to vector<8x128xi32>
    %38 = arith.addi %29, %37 : vector<8x128xi32>
    %39 = vector.extract_strided_slice %0 {offsets = [0, 4], sizes = [8, 1], strides = [1, 1]} : vector<8x8xi32> to vector<8x1xi32>
    %40 = vector.broadcast %39 : vector<8x1xi32> to vector<8x128xi32>
    %41 = arith.cmpi eq, %1, %40 : vector<8x128xi32>
    %c0_i32_5 = arith.constant 0 : i32
    %42 = vector.broadcast %c0_i32_5 : i32 to vector<8x1xi32>
    %43 = arith.cmpi ne, %39, %42 : vector<8x1xi32>
    %44 = vector.broadcast %43 : vector<8x1xi1> to vector<8x128xi1>
    %45 = arith.andi %41, %44 : vector<8x128xi1>
    %46 = arith.extui %45 : vector<8x128xi1> to vector<8x128xi32>
    %47 = arith.addi %38, %46 : vector<8x128xi32>
    %48 = vector.extract_strided_slice %0 {offsets = [0, 5], sizes = [8, 1], strides = [1, 1]} : vector<8x8xi32> to vector<8x1xi32>
    %49 = vector.broadcast %48 : vector<8x1xi32> to vector<8x128xi32>
    %50 = arith.cmpi eq, %1, %49 : vector<8x128xi32>
    %c0_i32_6 = arith.constant 0 : i32
    %51 = vector.broadcast %c0_i32_6 : i32 to vector<8x1xi32>
    %52 = arith.cmpi ne, %48, %51 : vector<8x1xi32>
    %53 = vector.broadcast %52 : vector<8x1xi1> to vector<8x128xi1>
    %54 = arith.andi %50, %53 : vector<8x128xi1>
    %55 = arith.extui %54 : vector<8x128xi1> to vector<8x128xi32>
    %56 = arith.addi %47, %55 : vector<8x128xi32>
    %57 = vector.extract_strided_slice %0 {offsets = [0, 6], sizes = [8, 1], strides = [1, 1]} : vector<8x8xi32> to vector<8x1xi32>
    %58 = vector.broadcast %57 : vector<8x1xi32> to vector<8x128xi32>
    %59 = arith.cmpi eq, %1, %58 : vector<8x128xi32>
    %c0_i32_7 = arith.constant 0 : i32
    %60 = vector.broadcast %c0_i32_7 : i32 to vector<8x1xi32>
    %61 = arith.cmpi ne, %57, %60 : vector<8x1xi32>
    %62 = vector.broadcast %61 : vector<8x1xi1> to vector<8x128xi1>
    %63 = arith.andi %59, %62 : vector<8x128xi1>
    %64 = arith.extui %63 : vector<8x128xi1> to vector<8x128xi32>
    %65 = arith.addi %56, %64 : vector<8x128xi32>
    %66 = vector.extract_strided_slice %0 {offsets = [0, 7], sizes = [8, 1], strides = [1, 1]} : vector<8x8xi32> to vector<8x1xi32>
    %67 = vector.broadcast %66 : vector<8x1xi32> to vector<8x128xi32>
    %68 = arith.cmpi eq, %1, %67 : vector<8x128xi32>
    %c0_i32_8 = arith.constant 0 : i32
    %69 = vector.broadcast %c0_i32_8 : i32 to vector<8x1xi32>
    %70 = arith.cmpi ne, %66, %69 : vector<8x1xi32>
    %71 = vector.broadcast %70 : vector<8x1xi1> to vector<8x128xi1>
    %72 = arith.andi %68, %71 : vector<8x128xi1>
    %73 = arith.extui %72 : vector<8x128xi1> to vector<8x128xi32>
    %74 = arith.addi %65, %73 : vector<8x128xi32>
    %75 = arith.sitofp %74 : vector<8x128xi32> to vector<8x128xf32>
    %cst = arith.constant dense<0.000000e+00> : vector<8xf32>
    %76 = vector.multi_reduction <add>, %75, %cst [1] : vector<8x128xf32> to vector<8xf32>
    %77 = vector.shape_cast %76 : vector<8xf32> to vector<8x1xf32>
    %cst_9 = arith.constant 1.000000e+00 : f32
    %78 = vector.broadcast %cst_9 : f32 to vector<8x1xf32>
    %79 = arith.maximumf %77, %78 : vector<8x1xf32>
    %80 = tpu.reciprocal %79 {approx = true} : vector<8x1xf32> -> vector<8x1xf32>
    %c0_10 = arith.constant 0 : index
    %c0_11 = arith.constant 0 : index
    %81 = vector.load %arg5[%c0_10, %c0_11] : memref<8x512xf32, #tpu.memory_space<vmem>>, vector<8x512xf32>
    %82 = vector.extract_strided_slice %81 {offsets = [0, 0], sizes = [1, 512], strides = [1, 1]} : vector<8x512xf32> to vector<1x512xf32>
    %83 = vector.extract_strided_slice %81 {offsets = [1, 0], sizes = [1, 512], strides = [1, 1]} : vector<8x512xf32> to vector<1x512xf32>
    %84 = vector.extract_strided_slice %81 {offsets = [2, 0], sizes = [1, 512], strides = [1, 1]} : vector<8x512xf32> to vector<1x512xf32>
    %85 = vector.extract_strided_slice %81 {offsets = [3, 0], sizes = [1, 512], strides = [1, 1]} : vector<8x512xf32> to vector<1x512xf32>
    %86 = vector.extract_strided_slice %81 {offsets = [4, 0], sizes = [1, 512], strides = [1, 1]} : vector<8x512xf32> to vector<1x512xf32>
    %c0_12 = arith.constant 0 : index
    %c0_13 = arith.constant 0 : index
    %87 = vector.load %arg3[%c0_12, %c0_13] : memref<128x128xf32, #tpu.memory_space<vmem>>, vector<128x128xf32>
    %cst_14 = arith.constant dense<0.000000e+00> : vector<8x128xf32>
    %88 = tpu.matmul %75, %87, %cst_14 {dimension_numbers = #tpu.dot_dimension_numbers<[1], [0], [0], [1], [0, 0, 1, 1], [], []>} : vector<8x128xf32>, vector<128x128xf32>, vector<8x128xf32> -> vector<8x128xf32>
    %89 = vector.broadcast %80 : vector<8x1xf32> to vector<8x128xf32>
    %90 = arith.mulf %88, %89 : vector<8x128xf32>
    %c0_15 = arith.constant 0 : index
    %c0_16 = arith.constant 0 : index
    %91 = vector.load %arg4[%c0_15, %c0_16] : memref<128x512xf32, #tpu.memory_space<vmem>>, vector<128x512xf32>
    %cst_17 = arith.constant dense<0.000000e+00> : vector<8x512xf32>
    %92 = tpu.matmul %90, %91, %cst_17 {dimension_numbers = #tpu.dot_dimension_numbers<[1], [0], [0], [1], [0, 0, 1, 1], [], []>} : vector<8x128xf32>, vector<128x512xf32>, vector<8x512xf32> -> vector<8x512xf32>
    %93 = vector.broadcast %82 : vector<1x512xf32> to vector<8x512xf32>
    %94 = arith.addf %92, %93 : vector<8x512xf32>
    %cst_18 = arith.constant dense<0.000000e+00> : vector<8xf32>
    %95 = vector.multi_reduction <add>, %94, %cst_18 [1] : vector<8x512xf32> to vector<8xf32>
    %96 = vector.shape_cast %95 : vector<8xf32> to vector<8x1xf32>
    %cst_19 = arith.constant 5.120000e+02 : f32
    %97 = vector.broadcast %cst_19 : f32 to vector<8x1xf32>
    %98 = arith.divf %96, %97 : vector<8x1xf32>
    %99 = arith.mulf %94, %94 : vector<8x512xf32>
    %cst_20 = arith.constant dense<0.000000e+00> : vector<8xf32>
    %100 = vector.multi_reduction <add>, %99, %cst_20 [1] : vector<8x512xf32> to vector<8xf32>
    %101 = vector.shape_cast %100 : vector<8xf32> to vector<8x1xf32>
    %cst_21 = arith.constant 5.120000e+02 : f32
    %102 = vector.broadcast %cst_21 : f32 to vector<8x1xf32>
    %103 = arith.divf %101, %102 : vector<8x1xf32>
    %104 = arith.mulf %98, %98 : vector<8x1xf32>
    %105 = arith.subf %103, %104 : vector<8x1xf32>
    %cst_22 = arith.constant 0.000000e+00 : f32
    %106 = vector.broadcast %cst_22 : f32 to vector<8x1xf32>
    %107 = arith.maximumf %105, %106 : vector<8x1xf32>
    %108 = vector.broadcast %98 : vector<8x1xf32> to vector<8x512xf32>
    %109 = arith.subf %94, %108 : vector<8x512xf32>
    %cst_23 = arith.constant 9.99999974E-6 : f32
    %110 = vector.broadcast %cst_23 : f32 to vector<8x1xf32>
    %111 = arith.addf %107, %110 : vector<8x1xf32>
    %112 = math.rsqrt %111 : vector<8x1xf32>
    %113 = vector.broadcast %112 : vector<8x1xf32> to vector<8x512xf32>
    %114 = arith.mulf %109, %113 : vector<8x512xf32>
    %115 = vector.broadcast %83 : vector<1x512xf32> to vector<8x512xf32>
    %116 = arith.mulf %114, %115 : vector<8x512xf32>
    %117 = vector.broadcast %84 : vector<1x512xf32> to vector<8x512xf32>
    %118 = arith.addf %116, %117 : vector<8x512xf32>
    %c0_24 = arith.constant 0 : index
    %c0_25 = arith.constant 0 : index
    %119 = vector.load %arg6[%c0_24, %c0_25] : memref<8x512xf32, #tpu.memory_space<vmem>>, vector<8x512xf32>
    tpu.vector_store %arg6[%c0_24, %c0_25], %118 {strides = array<i32>} : memref<8x512xf32, #tpu.memory_space<vmem>>, vector<8x512xf32>,
    %c0_26 = arith.constant 0 : index
    %c0_27 = arith.constant 0 : index
    %120 = vector.load %arg2[%c0_26, %c0_27] : memref<8x512xf32, #tpu.memory_space<vmem>>, vector<8x512xf32>
    %cst_28 = arith.constant dense<0.000000e+00> : vector<8xf32>
    %121 = vector.multi_reduction <add>, %120, %cst_28 [1] : vector<8x512xf32> to vector<8xf32>
    %122 = vector.shape_cast %121 : vector<8xf32> to vector<8x1xf32>
    %cst_29 = arith.constant 5.120000e+02 : f32
    %123 = vector.broadcast %cst_29 : f32 to vector<8x1xf32>
    %124 = arith.divf %122, %123 : vector<8x1xf32>
    %125 = arith.mulf %120, %120 : vector<8x512xf32>
    %cst_30 = arith.constant dense<0.000000e+00> : vector<8xf32>
    %126 = vector.multi_reduction <add>, %125, %cst_30 [1] : vector<8x512xf32> to vector<8xf32>
    %127 = vector.shape_cast %126 : vector<8xf32> to vector<8x1xf32>
    %cst_31 = arith.constant 5.120000e+02 : f32
    %128 = vector.broadcast %cst_31 : f32 to vector<8x1xf32>
    %129 = arith.divf %127, %128 : vector<8x1xf32>
    %130 = arith.mulf %124, %124 : vector<8x1xf32>
    %131 = arith.subf %129, %130 : vector<8x1xf32>
    %cst_32 = arith.constant 0.000000e+00 : f32
    %132 = vector.broadcast %cst_32 : f32 to vector<8x1xf32>
    %133 = arith.maximumf %131, %132 : vector<8x1xf32>
    %134 = vector.broadcast %124 : vector<8x1xf32> to vector<8x512xf32>
    %135 = arith.subf %120, %134 : vector<8x512xf32>
    %cst_33 = arith.constant 9.99999974E-6 : f32
    %136 = vector.broadcast %cst_33 : f32 to vector<8x1xf32>
    %137 = arith.addf %133, %136 : vector<8x1xf32>
    %138 = math.rsqrt %137 : vector<8x1xf32>
    %139 = vector.broadcast %138 : vector<8x1xf32> to vector<8x512xf32>
    %140 = arith.mulf %135, %139 : vector<8x512xf32>
    %141 = vector.broadcast %85 : vector<1x512xf32> to vector<8x512xf32>
    %142 = arith.mulf %140, %141 : vector<8x512xf32>
    %143 = vector.broadcast %86 : vector<1x512xf32> to vector<8x512xf32>
    %144 = arith.addf %142, %143 : vector<8x512xf32>
    %c0_34 = arith.constant 0 : index
    %c0_35 = arith.constant 0 : index
    %145 = vector.load %arg7[%c0_34, %c0_35] : memref<8x512xf32, #tpu.memory_space<vmem>>, vector<8x512xf32>
    tpu.vector_store %arg7[%c0_34, %c0_35], %144 {strides = array<i32>} : memref<8x512xf32, #tpu.memory_space<vmem>>, vector<8x512xf32>,
    return
  }
  func.func @transform_0(%arg0: i32) -> (i32, i32) {
    %c0_i32 = arith.constant 0 : i32
    %c0_i32_0 = arith.constant 0 : i32
    return %arg0, %c0_i32 : i32, i32
  }
  func.func @transform_1(%arg0: i32) -> (i32, i32) {
    %c0_i32 = arith.constant 0 : i32
    %c0_i32_0 = arith.constant 0 : i32
    return %arg0, %c0_i32 : i32, i32
  }
  func.func @transform_2(%arg0: i32) -> (i32, i32) {
    %c0_i32 = arith.constant 0 : i32
    %c0_i32_0 = arith.constant 0 : i32
    %c0_i32_1 = arith.constant 0 : i32
    return %c0_i32, %c0_i32_0 : i32, i32
  }
  func.func @transform_3(%arg0: i32) -> (i32, i32) {
    %c0_i32 = arith.constant 0 : i32
    %c0_i32_0 = arith.constant 0 : i32
    %c0_i32_1 = arith.constant 0 : i32
    return %c0_i32, %c0_i32_0 : i32, i32
  }
  func.func @transform_4(%arg0: i32) -> (i32, i32) {
    %c0_i32 = arith.constant 0 : i32
    %c0_i32_0 = arith.constant 0 : i32
    %c0_i32_1 = arith.constant 0 : i32
    return %c0_i32, %c0_i32_0 : i32, i32
  }
  func.func @transform_5(%arg0: i32) -> (i32, i32) {
    %c0_i32 = arith.constant 0 : i32
    %c0_i32_0 = arith.constant 0 : i32
    return %arg0, %c0_i32 : i32, i32
  }
  func.func @transform_6(%arg0: i32) -> (i32, i32) {
    %c0_i32 = arith.constant 0 : i32
    %c0_i32_0 = arith.constant 0 : i32
    return %arg0, %c0_i32 : i32, i32
  }
}

</mosaic_0001>

<llo_original>
// kernel: tpu_custom_call.1
$region0: #{tpu_custom_call.1}
  #allocation0 [shape = 'u32[]', space=smem, size = 0x4, offset = 0x4, fixed_abs, tag = 'smem constant byte address 0x4 - core index']
  #allocation1 [shape = 'u32[144,128]{1,0:T(1,128)}', space=vmem, size = 0x12000, scoped, tag = 'internal scratch']
  %s0 = inlined_call_operand.hbm [shape: s32[8,8], index: 0, kind: input, shape index: {}]
  %s1 = inlined_call_operand.hbm [shape: f32[8,512], index: 1, kind: input, shape index: {}]
  %s2 = inlined_call_operand.hbm [shape: f32[128,128], index: 2, kind: input, shape index: {}]
  %s3 = inlined_call_operand.hbm [shape: f32[128,512], index: 3, kind: input, shape index: {}]
  %s4 = inlined_call_operand.hbm [shape: f32[8,512], index: 4, kind: input, shape index: {}]
  %s5 = inlined_call_operand.hbm [shape: f32[8,512], index: 5, kind: output, shape index: {0}]
  %s6 = inlined_call_operand.hbm [shape: f32[8,512], index: 6, kind: output, shape index: {1}]
  %7 = xla_tuple %s5, %s6
  %s8 = sld [smem:[#allocation0]]
  $region58: #{tpu_custom_call.1} parent=0
    _
  %s10 = ssub.s32 1, %s8
  %s11 = scalar_select 0, %s10, %s8
  $region1: #{tpu_custom_call.1} parent=0
    #allocation2 [shape = 'u8[4096]{0}', space=vmem, size = 0x1000, scoped, tag = 'input window, operand 0, single buffered']
    #allocation3 [shape = 's32[1]{0}', space=sflag, size = 0x4, scoped, tag = 'scoped memory for tpu_custom_call.1']
    #allocation4 [shape = 's32[1]{0}', space=sflag, size = 0x4, scoped, tag = 'scoped memory for tpu_custom_call.1']
    #allocation5 [shape = 'u8[16384]{0}', space=vmem, size = 0x4000, scoped, tag = 'input window, operand 1, single buffered']
    #allocation6 [shape = 's32[1]{0}', space=sflag, size = 0x4, scoped, tag = 'scoped memory for tpu_custom_call.1']
    #allocation7 [shape = 'u8[65536]{0}', space=vmem, size = 0x10000, scoped, tag = 'input window, operand 2, single buffered']
    #allocation8 [shape = 'u8[262144]{0}', space=vmem, size = 0x40000, scoped, tag = 'input window, operand 3, single buffered']
    #allocation9 [shape = 's32[1]{0}', space=sflag, size = 0x4, scoped, tag = 'scoped memory for tpu_custom_call.1']
    #allocation10 [shape = 'u8[16384]{0}', space=vmem, size = 0x4000, scoped, tag = 'input window, operand 4, single buffered']
    #allocation11 [shape = 'u8[16384]{0}', space=vmem, size = 0x4000, scoped, tag = 'output window, operand 0, single buffered']
    #allocation12 [shape = 'u8[16384]{0}', space=vmem, size = 0x4000, scoped, tag = 'output window, operand 1, single buffered']
    #allocation13 [shape = 's32[1]{0}', space=sflag, size = 0x4, scoped, tag = 'scoped memory for tpu_custom_call.1']
    %12 = vsyncpa [#allocation3], 0
    %13 = vsyncpa [#allocation6], 0
    %14 = vsyncpa [#allocation9], 0
    %15 = vsyncpa [#allocation4], 0
    %16 = vsyncpa [#allocation13], 0
    // Predicated region
    $region2: #{tpu_custom_call.1} parent=1 // pred_check
      _
    $region3: #{tpu_custom_call.1} parent=1 // pred_check_branch
      %18 = sbr.rel (0) target = $region5
    $region4: #{tpu_custom_call.1} parent=1 // pred_region
      %s20 = ssub.s32 128, 128
      %21 = vsyncadd [#allocation3], %s20
      %s23 = sshll.u32 [#allocation2], 4
      %s24 = int_to_ptr.vmem [resolvable:$true] %s23
      %26 = dma.hbm_to_vmem [thread:$0]  %s0, 128, %s24, [#allocation3]
    $region5: #{tpu_custom_call.1} parent=1 // pred_fallthru
      _
    // Predicated region
    $region6: #{tpu_custom_call.1} parent=1 // pred_check
      _
    $region7: #{tpu_custom_call.1} parent=1 // pred_check_branch
      %28 = sbr.rel (0) target = $region9
    $region8: #{tpu_custom_call.1} parent=1 // pred_region
      %s30 = ssub.s32 512, 512
      %31 = vsyncadd [#allocation6], %s30
      %s33 = sshll.u32 [#allocation5], 4
      %s34 = int_to_ptr.vmem [resolvable:$true] %s33
      %36 = dma.hbm_to_vmem [thread:$0]  %s1, 512, %s34, [#allocation6]
    $region9: #{tpu_custom_call.1} parent=1 // pred_fallthru
      _
    // Predicated region
    $region10: #{tpu_custom_call.1} parent=1 // pred_check
      _
    $region11: #{tpu_custom_call.1} parent=1 // pred_check_branch
      %38 = sbr.rel (0) target = $region13
    $region12: #{tpu_custom_call.1} parent=1 // pred_region
      %s40 = ssub.s32 2048, 2048
      %41 = vsyncadd [#allocation6], %s40
      %s42 = sshll.u32 [#allocation7], 4
      %s43 = int_to_ptr.vmem [resolvable:$true] %s42
      %48 = dma.hbm_to_vmem [thread:$0]  %s2, 2048, %s43, [#allocation6], 128, 128, 8
    $region13: #{tpu_custom_call.1} parent=1 // pred_fallthru
      _
    // Predicated region
    $region14: #{tpu_custom_call.1} parent=1 // pred_check
      _
    $region15: #{tpu_custom_call.1} parent=1 // pred_check_branch
      %50 = sbr.rel (0) target = $region17
    $region16: #{tpu_custom_call.1} parent=1 // pred_region
      %s52 = ssub.s32 8192, 8192
      %53 = vsyncadd [#allocation9], %s52
      %s54 = sshll.u32 [#allocation8], 4
      %s55 = int_to_ptr.vmem [resolvable:$true] %s54
      %60 = dma.hbm_to_vmem [thread:$0]  %s3, 8192, %s55, [#allocation9], 512, 512, 32
    $region17: #{tpu_custom_call.1} parent=1 // pred_fallthru
      _
    // Predicated region
    $region18: #{tpu_custom_call.1} parent=1 // pred_check
      _
    $region19: #{tpu_custom_call.1} parent=1 // pred_check_branch
      %62 = sbr.rel (0) target = $region21
    $region20: #{tpu_custom_call.1} parent=1 // pred_region
      %s64 = ssub.s32 512, 512
      %65 = vsyncadd [#allocation9], %s64
      %s67 = sshll.u32 [#allocation10], 4
      %s68 = int_to_ptr.vmem [resolvable:$true] %s67
      %70 = dma.hbm_to_vmem [thread:$0]  %s4, 512, %s68, [#allocation9]
    $region21: #{tpu_custom_call.1} parent=1 // pred_fallthru
      _
    // Predicated region
    $region22: #{tpu_custom_call.1} parent=1 // pred_check
      _
    $region23: #{tpu_custom_call.1} parent=1 // pred_check_branch
      %72 = sbr.rel (0) target = $region25
    $region24: #{tpu_custom_call.1} parent=1 // pred_region
      %73 = dma.done [#allocation3], 128
    $region25: #{tpu_custom_call.1} parent=1 // pred_fallthru
      _
    // Predicated region
    $region26: #{tpu_custom_call.1} parent=1 // pred_check
      _
    $region27: #{tpu_custom_call.1} parent=1 // pred_check_branch
      %75 = sbr.rel (0) target = $region29
    $region28: #{tpu_custom_call.1} parent=1 // pred_region
      %76 = dma.done [#allocation6], 512
    $region29: #{tpu_custom_call.1} parent=1 // pred_fallthru
      _
    // Predicated region
    $region30: #{tpu_custom_call.1} parent=1 // pred_check
      _
    $region31: #{tpu_custom_call.1} parent=1 // pred_check_branch
      %78 = sbr.rel (0) target = $region33
    $region32: #{tpu_custom_call.1} parent=1 // pred_region
      %79 = dma.done [#allocation6], 2048
    $region33: #{tpu_custom_call.1} parent=1 // pred_fallthru
      _
    // Predicated region
    $region34: #{tpu_custom_call.1} parent=1 // pred_check
      _
    $region35: #{tpu_custom_call.1} parent=1 // pred_check_branch
      %81 = sbr.rel (0) target = $region37
    $region36: #{tpu_custom_call.1} parent=1 // pred_region
      %82 = dma.done [#allocation9], 8192
    $region37: #{tpu_custom_call.1} parent=1 // pred_fallthru
      _
    // Predicated region
    $region38: #{tpu_custom_call.1} parent=1 // pred_check
      _
    $region39: #{tpu_custom_call.1} parent=1 // pred_check_branch
      %84 = sbr.rel (0) target = $region41
    $region40: #{tpu_custom_call.1} parent=1 // pred_region
      %85 = dma.done [#allocation9], 512
    $region41: #{tpu_custom_call.1} parent=1 // pred_fallthru
      _
    %v86 = vld [vmem:[#allocation2] sm:$0xff]
    %v87 = vlaneseq
    %v88 = vand.u32 %v87, 127
    %89 = vset.pattern.permute.xlu0 0
    %90 = vperm.xlu0 %89, %v86
    %v91 = vpop.permute.xlu0 %90
    %vm92 = vcmp.eq.s32.totalorder %v88, %v91
    %vm93 = vcmp.ne.s32.totalorder %v86, 0
    %v94 = vsel %vm93, 1, 0
    %95 = vset.pattern.permute.xlu0 0
    %96 = vperm.xlu0 %95, %v94
    %v97 = vpop.permute.xlu0 %96
    %vm98 = vcmp.eq.s32.totalorder %v97, 1
    %vm99 = vmand %vm92, %vm98
    %v100 = vsel %vm99, 1, 0
    %101 = vset.pattern.permute.xlu0 1
    %102 = vperm.xlu0 %101, %v86
    %v103 = vpop.permute.xlu0 %102
    %vm104 = vcmp.eq.s32.totalorder %v88, %v103
    %105 = vset.pattern.permute.xlu0 1
    %106 = vperm.xlu0 %105, %v94
    %v107 = vpop.permute.xlu0 %106
    %vm108 = vcmp.eq.s32.totalorder %v107, 1
    %vm109 = vmand %vm104, %vm108
    %v110 = vsel %vm109, 1, 0
    %v111 = vadd.s32 %v100, %v110
    %112 = vset.pattern.permute.xlu0 2
    %113 = vperm.xlu0 %112, %v86
    %v114 = vpop.permute.xlu0 %113
    %vm115 = vcmp.eq.s32.totalorder %v88, %v114
    %116 = vset.pattern.permute.xlu0 2
    %117 = vperm.xlu0 %116, %v94
    %v118 = vpop.permute.xlu0 %117
    %vm119 = vcmp.eq.s32.totalorder %v118, 1
    %vm120 = vmand %vm115, %vm119
    %v121 = vsel %vm120, 1, 0
    %v122 = vadd.s32 %v111, %v121
    %123 = vset.pattern.permute.xlu0 3
    %124 = vperm.xlu0 %123, %v86
    %v125 = vpop.permute.xlu0 %124
    %vm126 = vcmp.eq.s32.totalorder %v88, %v125
    %127 = vset.pattern.permute.xlu0 3
    %128 = vperm.xlu0 %127, %v94
    %v129 = vpop.permute.xlu0 %128
    %vm130 = vcmp.eq.s32.totalorder %v129, 1
    %vm131 = vmand %vm126, %vm130
    %v132 = vsel %vm131, 1, 0
    %v133 = vadd.s32 %v122, %v132
    %134 = vset.pattern.permute.xlu0 4
    %135 = vperm.xlu0 %134, %v86
    %v136 = vpop.permute.xlu0 %135
    %vm137 = vcmp.eq.s32.totalorder %v88, %v136
    %138 = vset.pattern.permute.xlu0 4
    %139 = vperm.xlu0 %138, %v94
    %v140 = vpop.permute.xlu0 %139
    %vm141 = vcmp.eq.s32.totalorder %v140, 1
    %vm142 = vmand %vm137, %vm141
    %v143 = vsel %vm142, 1, 0
    %v144 = vadd.s32 %v133, %v143
    %145 = vset.pattern.permute.xlu0 5
    %146 = vperm.xlu0 %145, %v86
    %v147 = vpop.permute.xlu0 %146
    %vm148 = vcmp.eq.s32.totalorder %v88, %v147
    %149 = vset.pattern.permute.xlu0 5
    %150 = vperm.xlu0 %149, %v94
    %v151 = vpop.permute.xlu0 %150
    %vm152 = vcmp.eq.s32.totalorder %v151, 1
    %vm153 = vmand %vm148, %vm152
    %v154 = vsel %vm153, 1, 0
    %v155 = vadd.s32 %v144, %v154
    %156 = vset.pattern.permute.xlu0 6
    %157 = vperm.xlu0 %156, %v86
    %v158 = vpop.permute.xlu0 %157
    %vm159 = vcmp.eq.s32.totalorder %v88, %v158
    %160 = vset.pattern.permute.xlu0 6
    %161 = vperm.xlu0 %160, %v94
    %v162 = vpop.permute.xlu0 %161
    %vm163 = vcmp.eq.s32.totalorder %v162, 1
    %vm164 = vmand %vm159, %vm163
    %v165 = vsel %vm164, 1, 0
    %v166 = vadd.s32 %v155, %v165
    %167 = vset.pattern.permute.xlu0 7
    %168 = vperm.xlu0 %167, %v86
    %v169 = vpop.permute.xlu0 %168
    %vm170 = vcmp.eq.s32.totalorder %v88, %v169
    %171 = vset.pattern.permute.xlu0 7
    %172 = vperm.xlu0 %171, %v94
    %v173 = vpop.permute.xlu0 %172
    %vm174 = vcmp.eq.s32.totalorder %v173, 1
    %vm175 = vmand %vm170, %vm174
    %v176 = vsel %vm175, 1, 0
    %v177 = vadd.s32 %v166, %v176
    %v178 = vcvt.s32.f32 %v177
    %179 = vadd.xlane.f32.xlu0 %v178
    %v180 = vpop.xlane.xlu0 %179
    %v181 = vmax.f32 %v180, 1.0
    %v182 = vrcp.pop %v181
    %v183 = vld [vmem:[#allocation10] sm:$0xff]
    %v184 = vld [vmem:[#allocation10 + $0x8] sm:$0xff]
    %v185 = vld [vmem:[#allocation10 + $0x10] sm:$0xff]
    %v186 = vld [vmem:[#allocation10 + $0x18] sm:$0xff]
    %v187 = vld [vmem:[#allocation7] sm:$0xff]
    %v188 = vld [vmem:[#allocation7 + $0x8] sm:$0xff]
    %v189 = vld [vmem:[#allocation7 + $0x10] sm:$0xff]
    %v190 = vld [vmem:[#allocation7 + $0x18] sm:$0xff]
    %v191 = vld [vmem:[#allocation7 + $0x20] sm:$0xff]
    %v192 = vld [vmem:[#allocation7 + $0x28] sm:$0xff]
    %v193 = vld [vmem:[#allocation7 + $0x30] sm:$0xff]
    %v194 = vld [vmem:[#allocation7 + $0x38] sm:$0xff]
    %v195 = vld [vmem:[#allocation7 + $0x40] sm:$0xff]
    %v196 = vld [vmem:[#allocation7 + $0x48] sm:$0xff]
    %v197 = vld [vmem:[#allocation7 + $0x50] sm:$0xff]
    %v198 = vld [vmem:[#allocation7 + $0x58] sm:$0xff]
    %v199 = vld [vmem:[#allocation7 + $0x60] sm:$0xff]
    %v200 = vld [vmem:[#allocation7 + $0x68] sm:$0xff]
    %v201 = vld [vmem:[#allocation7 + $0x70] sm:$0xff]
    %v202 = vld [vmem:[#allocation7 + $0x78] sm:$0xff]
    %203 = vmatprep.subr.mxu0 0.0
    %204 = vmatpush1.msra.mxu0 %v187
    %205 = vmatprep.subr.mxu0 0.0
    %206 = vmatpush1.msra.mxu0 %v188
    %207 = vmatprep.subr.mxu0 0.0
    %208 = vmatpush1.msra.mxu0 %v189
    %209 = vmatprep.subr.mxu0 0.0
    %210 = vmatpush1.msra.mxu0 %v190
    %211 = vmatprep.subr.mxu0 0.0
    %212 = vmatpush1.msra.mxu0 %v191
    %213 = vmatprep.subr.mxu0 0.0
    %214 = vmatpush1.msra.mxu0 %v192
    %215 = vmatprep.subr.mxu0 0.0
    %216 = vmatpush1.msra.mxu0 %v193
    %217 = vmatprep.subr.mxu0 0.0
    %218 = vmatpush1.msra.mxu0 %v194
    %219 = vmatprep.subr.mxu0 0.0
    %220 = vmatpush1.msra.mxu0 %v195
    %221 = vmatprep.subr.mxu0 0.0
    %222 = vmatpush1.msra.mxu0 %v196
    %223 = vmatprep.subr.mxu0 0.0
    %224 = vmatpush1.msra.mxu0 %v197
    %225 = vmatprep.subr.mxu0 0.0
    %226 = vmatpush1.msra.mxu0 %v198
    %227 = vmatprep.subr.mxu0 0.0
    %228 = vmatpush1.msra.mxu0 %v199
    %229 = vmatprep.subr.mxu0 0.0
    %230 = vmatpush1.msra.mxu0 %v200
    %231 = vmatprep.subr.mxu0 0.0
    %232 = vmatpush1.msra.mxu0 %v201
    %233 = vmatprep.subr.mxu0 0.0
    %234 = vmatpush1.msra.mxu0 %v202
    %235 = vmatprep.subr.mxu0 0.0
    %236 = vmatpush1.msra.mxu0 0.0
    %237 = vmatprep.subr.mxu0 0.0
    %238 = vmatpush1.msra.mxu0 0.0
    %239 = vmatprep.subr.mxu0 0.0
    %240 = vmatpush1.msra.mxu0 0.0
    %241 = vmatprep.subr.mxu0 0.0
    %242 = vmatpush1.msra.mxu0 0.0
    %243 = vmatprep.subr.mxu0 0.0
    %244 = vmatpush1.msra.mxu0 0.0
    %245 = vmatprep.subr.mxu0 0.0
    %246 = vmatpush1.msra.mxu0 0.0
    %247 = vmatprep.subr.mxu0 0.0
    %248 = vmatpush1.msra.mxu0 0.0
    %249 = vmatprep.subr.mxu0 0.0
    %250 = vmatpush1.msra.mxu0 0.0
    %251 = vmatprep.subr.mxu0 0.0
    %252 = vmatpush1.msra.mxu0 0.0
    %253 = vmatprep.subr.mxu0 0.0
    %254 = vmatpush1.msra.mxu0 0.0
    %255 = vmatprep.subr.mxu0 0.0
    %256 = vmatpush1.msra.mxu0 0.0
    %257 = vmatprep.subr.mxu0 0.0
    %258 = vmatpush1.msra.mxu0 0.0
    %259 = vmatprep.subr.mxu0 0.0
    %260 = vmatpush1.msra.mxu0 0.0
    %261 = vmatprep.subr.mxu0 0.0
    %262 = vmatpush1.msra.mxu0 0.0
    %263 = vmatprep.subr.mxu0 0.0
    %264 = vmatpush1.msra.mxu0 0.0
    %265 = vmatprep.subr.mxu0 0.0
    %266 = vmatpush1.msra.mxu0 0.0
    %267 = vmatprep.mubr.f32.mxu0 0.0
    %268 = vmatmul.mubr.f32.gmra.mrb[0].mxu0 %v178
    %v269 = vpop.f32.mrb[0].mxu0
    %v270 = vadd.f32 0.0, %v269
    %v271 = vpop.f32.mrb[0].mxu0
    %272 = vdwg.mxu0
    %v273 = vmul.f32 %v270, %v182
    %v274 = vld [vmem:[#allocation8] sm:$0xff]
    %v275 = vld [vmem:[#allocation8 + $0x8] sm:$0xff]
    %v276 = vld [vmem:[#allocation8 + $0x10] sm:$0xff]
    %v277 = vld [vmem:[#allocation8 + $0x18] sm:$0xff]
    %v278 = vld [vmem:[#allocation8 + $0x20] sm:$0xff]
    %v279 = vld [vmem:[#allocation8 + $0x28] sm:$0xff]
    %v280 = vld [vmem:[#allocation8 + $0x30] sm:$0xff]
    %v281 = vld [vmem:[#allocation8 + $0x38] sm:$0xff]
    %v282 = vld [vmem:[#allocation8 + $0x40] sm:$0xff]
    %v283 = vld [vmem:[#allocation8 + $0x48] sm:$0xff]
    %v284 = vld [vmem:[#allocation8 + $0x50] sm:$0xff]
    %v285 = vld [vmem:[#allocation8 + $0x58] sm:$0xff]
    %v286 = vld [vmem:[#allocation8 + $0x60] sm:$0xff]
    %v287 = vld [vmem:[#allocation8 + $0x68] sm:$0xff]
    %v288 = vld [vmem:[#allocation8 + $0x70] sm:$0xff]
    %v289 = vld [vmem:[#allocation8 + $0x78] sm:$0xff]
    %v290 = vld [vmem:[#allocation8 + $0x80] sm:$0xff]
    %v291 = vld [vmem:[#allocation8 + $0x88] sm:$0xff]
    %v292 = vld [vmem:[#allocation8 + $0x90] sm:$0xff]
    %v293 = vld [vmem:[#allocation8 + $0x98] sm:$0xff]
    %v294 = vld [vmem:[#allocation8 + $0xa0] sm:$0xff]
    %v295 = vld [vmem:[#allocation8 + $0xa8] sm:$0xff]
    %v296 = vld [vmem:[#allocation8 + $0xb0] sm:$0xff]
    %v297 = vld [vmem:[#allocation8 + $0xb8] sm:$0xff]
    %v298 = vld [vmem:[#allocation8 + $0xc0] sm:$0xff]
    %v299 = vld [vmem:[#allocation8 + $0xc8] sm:$0xff]
    %v300 = vld [vmem:[#allocation8 + $0xd0] sm:$0xff]
    %v301 = vld [vmem:[#allocation8 + $0xd8] sm:$0xff]
    %v302 = vld [vmem:[#allocation8 + $0xe0] sm:$0xff]
    %v303 = vld [vmem:[#allocation8 + $0xe8] sm:$0xff]
    %v304 = vld [vmem:[#allocation8 + $0xf0] sm:$0xff]
    %v305 = vld [vmem:[#allocation8 + $0xf8] sm:$0xff]
    %v306 = vld [vmem:[#allocation8 + $0x100] sm:$0xff]
    %v307 = vld [vmem:[#allocation8 + $0x108] sm:$0xff]
    %v308 = vld [vmem:[#allocation8 + $0x110] sm:$0xff]
    %v309 = vld [vmem:[#allocation8 + $0x118] sm:$0xff]
    %v310 = vld [vmem:[#allocation8 + $0x120] sm:$0xff]
    %v311 = vld [vmem:[#allocation8 + $0x128] sm:$0xff]
    %v312 = vld [vmem:[#allocation8 + $0x130] sm:$0xff]
    %v313 = vld [vmem:[#allocation8 + $0x138] sm:$0xff]
    %v314 = vld [vmem:[#allocation8 + $0x140] sm:$0xff]
    %v315 = vld [vmem:[#allocation8 + $0x148] sm:$0xff]
    %v316 = vld [vmem:[#allocation8 + $0x150] sm:$0xff]
    %v317 = vld [vmem:[#allocation8 + $0x158] sm:$0xff]
    %v318 = vld [vmem:[#allocation8 + $0x160] sm:$0xff]
    %v319 = vld [vmem:[#allocation8 + $0x168] sm:$0xff]
    %v320 = vld [vmem:[#allocation8 + $0x170] sm:$0xff]
    %v321 = vld [vmem:[#allocation8 + $0x178] sm:$0xff]
    %v322 = vld [vmem:[#allocation8 + $0x180] sm:$0xff]
    %v323 = vld [vmem:[#allocation8 + $0x188] sm:$0xff]
    %v324 = vld [vmem:[#allocation8 + $0x190] sm:$0xff]
    %v325 = vld [vmem:[#allocation8 + $0x198] sm:$0xff]
    %v326 = vld [vmem:[#allocation8 + $0x1a0] sm:$0xff]
    %v327 = vld [vmem:[#allocation8 + $0x1a8] sm:$0xff]
    %v328 = vld [vmem:[#allocation8 + $0x1b0] sm:$0xff]
    %v329 = vld [vmem:[#allocation8 + $0x1b8] sm:$0xff]
    %v330 = vld [vmem:[#allocation8 + $0x1c0] sm:$0xff]
    %v331 = vld [vmem:[#allocation8 + $0x1c8] sm:$0xff]
    %v332 = vld [vmem:[#allocation8 + $0x1d0] sm:$0xff]
    %v333 = vld [vmem:[#allocation8 + $0x1d8] sm:$0xff]
    %v334 = vld [vmem:[#allocation8 + $0x1e0] sm:$0xff]
    %v335 = vld [vmem:[#allocation8 + $0x1e8] sm:$0xff]
    %v336 = vld [vmem:[#allocation8 + $0x1f0] sm:$0xff]
    %v337 = vld [vmem:[#allocation8 + $0x1f8] sm:$0xff]
    %v338 = vlaneseq
    %v339 = vshrl.u32 %v338, 7
    %v340 = vsub.s32 0, %v339
    %v341 = vrot.slane %v183, %v340
    %v342 = vlaneseq
    %v343 = vshrl.u32 %v342, 7
    %v344 = vsub.s32 0, %v343
    %v345 = vrot.slane %v184, %v344
    %v346 = vlaneseq
    %v347 = vshrl.u32 %v346, 7
    %v348 = vsub.s32 0, %v347
    %v349 = vrot.slane %v185, %v348
    %v350 = vlaneseq
    %v351 = vshrl.u32 %v350, 7
    %v352 = vsub.s32 0, %v351
    %v353 = vrot.slane %v186, %v352
    %354 = vmatprep.subr.mxu0 %v275
    %355 = vmatpush1.msra.mxu0 %v274
    %356 = vmatprep.subr.mxu0 %v279
    %357 = vmatpush1.msra.mxu0 %v278
    %358 = vmatprep.subr.mxu0 %v283
    %359 = vmatpush1.msra.mxu0 %v282
    %360 = vmatprep.subr.mxu0 %v287
    %361 = vmatpush1.msra.mxu0 %v286
    %362 = vmatprep.subr.mxu0 %v291
    %363 = vmatpush1.msra.mxu0 %v290
    %364 = vmatprep.subr.mxu0 %v295
    %365 = vmatpush1.msra.mxu0 %v294
    %366 = vmatprep.subr.mxu0 %v299
    %367 = vmatpush1.msra.mxu0 %v298
    %368 = vmatprep.subr.mxu0 %v303
    %369 = vmatpush1.msra.mxu0 %v302
    %370 = vmatprep.subr.mxu0 %v307
    %371 = vmatpush1.msra.mxu0 %v306
    %372 = vmatprep.subr.mxu0 %v311
    %373 = vmatpush1.msra.mxu0 %v310
    %374 = vmatprep.subr.mxu0 %v315
    %375 = vmatpush1.msra.mxu0 %v314
    %376 = vmatprep.subr.mxu0 %v319
    %377 = vmatpush1.msra.mxu0 %v318
    %378 = vmatprep.subr.mxu0 %v323
    %379 = vmatpush1.msra.mxu0 %v322
    %380 = vmatprep.subr.mxu0 %v327
    %381 = vmatpush1.msra.mxu0 %v326
    %382 = vmatprep.subr.mxu0 %v331
    %383 = vmatpush1.msra.mxu0 %v330
    %384 = vmatprep.subr.mxu0 %v335
    %385 = vmatpush1.msra.mxu0 %v334
    %386 = vmatprep.subr.mxu0 0.0
    %387 = vmatpush1.msra.mxu0 0.0
    %388 = vmatprep.subr.mxu0 0.0
    %389 = vmatpush1.msra.mxu0 0.0
    %390 = vmatprep.subr.mxu0 0.0
    %391 = vmatpush1.msra.mxu0 0.0
    %392 = vmatprep.subr.mxu0 0.0
    %393 = vmatpush1.msra.mxu0 0.0
    %394 = vmatprep.subr.mxu0 0.0
    %395 = vmatpush1.msra.mxu0 0.0
    %396 = vmatprep.subr.mxu0 0.0
    %397 = vmatpush1.msra.mxu0 0.0
    %398 = vmatprep.subr.mxu0 0.0
    %399 = vmatpush1.msra.mxu0 0.0
    %400 = vmatprep.subr.mxu0 0.0
    %401 = vmatpush1.msra.mxu0 0.0
    %402 = vmatprep.subr.mxu0 0.0
    %403 = vmatpush1.msra.mxu0 0.0
    %404 = vmatprep.subr.mxu0 0.0
    %405 = vmatpush1.msra.mxu0 0.0
    %406 = vmatprep.subr.mxu0 0.0
    %407 = vmatpush1.msra.mxu0 0.0
    %408 = vmatprep.subr.mxu0 0.0
    %409 = vmatpush1.msra.mxu0 0.0
    %410 = vmatprep.subr.mxu0 0.0
    %411 = vmatpush1.msra.mxu0 0.0
    %412 = vmatprep.subr.mxu0 0.0
    %413 = vmatpush1.msra.mxu0 0.0
    %414 = vmatprep.subr.mxu0 0.0
    %415 = vmatpush1.msra.mxu0 0.0
    %416 = vmatprep.subr.mxu0 0.0
    %417 = vmatpush1.msra.mxu0 0.0
    %418 = vmatprep.mubr.f32.mxu0 0.0
    %419 = vmatmul.mubr.f32.gmra.mrb[0].mxu0 %v273
    %v420 = vpop.f32.mrb[0].mxu0
    %v421 = vadd.f32 %v341, %v420
    %v422 = vpop.f32.mrb[0].mxu0
    %v423 = vadd.f32 %v345, %v422
    %424 = vdwg.mxu0
    %425 = vmatprep.subr.mxu0 %v277
    %426 = vmatpush1.msra.mxu0 %v276
    %427 = vmatprep.subr.mxu0 %v281
    %428 = vmatpush1.msra.mxu0 %v280
    %429 = vmatprep.subr.mxu0 %v285
    %430 = vmatpush1.msra.mxu0 %v284
    %431 = vmatprep.subr.mxu0 %v289
    %432 = vmatpush1.msra.mxu0 %v288
    %433 = vmatprep.subr.mxu0 %v293
    %434 = vmatpush1.msra.mxu0 %v292
    %435 = vmatprep.subr.mxu0 %v297
    %436 = vmatpush1.msra.mxu0 %v296
    %437 = vmatprep.subr.mxu0 %v301
    %438 = vmatpush1.msra.mxu0 %v300
    %439 = vmatprep.subr.mxu0 %v305
    %440 = vmatpush1.msra.mxu0 %v304
    %441 = vmatprep.subr.mxu0 %v309
    %442 = vmatpush1.msra.mxu0 %v308
    %443 = vmatprep.subr.mxu0 %v313
    %444 = vmatpush1.msra.mxu0 %v312
    %445 = vmatprep.subr.mxu0 %v317
    %446 = vmatpush1.msra.mxu0 %v316
    %447 = vmatprep.subr.mxu0 %v321
    %448 = vmatpush1.msra.mxu0 %v320
    %449 = vmatprep.subr.mxu0 %v325
    %450 = vmatpush1.msra.mxu0 %v324
    %451 = vmatprep.subr.mxu0 %v329
    %452 = vmatpush1.msra.mxu0 %v328
    %453 = vmatprep.subr.mxu0 %v333
    %454 = vmatpush1.msra.mxu0 %v332
    %455 = vmatprep.subr.mxu0 %v337
    %456 = vmatpush1.msra.mxu0 %v336
    %457 = vmatprep.subr.mxu0 0.0
    %458 = vmatpush1.msra.mxu0 0.0
    %459 = vmatprep.subr.mxu0 0.0
    %460 = vmatpush1.msra.mxu0 0.0
    %461 = vmatprep.subr.mxu0 0.0
    %462 = vmatpush1.msra.mxu0 0.0
    %463 = vmatprep.subr.mxu0 0.0
    %464 = vmatpush1.msra.mxu0 0.0
    %465 = vmatprep.subr.mxu0 0.0
    %466 = vmatpush1.msra.mxu0 0.0
    %467 = vmatprep.subr.mxu0 0.0
    %468 = vmatpush1.msra.mxu0 0.0
    %469 = vmatprep.subr.mxu0 0.0
    %470 = vmatpush1.msra.mxu0 0.0
    %471 = vmatprep.subr.mxu0 0.0
    %472 = vmatpush1.msra.mxu0 0.0
    %473 = vmatprep.subr.mxu0 0.0
    %474 = vmatpush1.msra.mxu0 0.0
    %475 = vmatprep.subr.mxu0 0.0
    %476 = vmatpush1.msra.mxu0 0.0
    %477 = vmatprep.subr.mxu0 0.0
    %478 = vmatpush1.msra.mxu0 0.0
    %479 = vmatprep.subr.mxu0 0.0
    %480 = vmatpush1.msra.mxu0 0.0
    %481 = vmatprep.subr.mxu0 0.0
    %482 = vmatpush1.msra.mxu0 0.0
    %483 = vmatprep.subr.mxu0 0.0
    %484 = vmatpush1.msra.mxu0 0.0
    %485 = vmatprep.subr.mxu0 0.0
    %486 = vmatpush1.msra.mxu0 0.0
    %487 = vmatprep.subr.mxu0 0.0
    %488 = vmatpush1.msra.mxu0 0.0
    %489 = vmatprep.mubr.f32.mxu0 0.0
    %490 = vmatmul.mubr.f32.gmra.mrb[0].mxu0 %v273
    %v491 = vpop.f32.mrb[0].mxu0
    %v492 = vadd.f32 %v349, %v491
    %v493 = vpop.f32.mrb[0].mxu0
    %v494 = vadd.f32 %v353, %v493
    %495 = vdwg.mxu0
    %v496 = vadd.f32 %v421, %v423
    %v497 = vadd.f32 %v496, %v492
    %v498 = vadd.f32 %v497, %v494
    %499 = vadd.xlane.f32.xlu0 %v498
    %v500 = vpop.xlane.xlu0 %499
    %v501 = vrcp.pop 512.0
    %v502 = vmul.f32 %v500, %v501
    %v503 = vmul.f32 %v421, %v421
    %v504 = vmul.f32 %v423, %v423
    %v505 = vmul.f32 %v492, %v492
    %v506 = vmul.f32 %v494, %v494
    %v507 = vadd.f32 %v503, %v504
    %v508 = vadd.f32 %v507, %v505
    %v509 = vadd.f32 %v508, %v506
    %510 = vadd.xlane.f32.xlu0 %v509
    %v511 = vpop.xlane.xlu0 %510
    %v512 = vmul.f32 %v511, %v501
    %v513 = vmul.f32 %v502, %v502
    %v514 = vsub.f32 %v512, %v513
    %v515 = vmax.f32 %v514, 0.0
    %v516 = vsub.f32 %v421, %v502
    %v517 = vsub.f32 %v423, %v502
    %v518 = vsub.f32 %v492, %v502
    %v519 = vsub.f32 %v494, %v502
    %v520 = vadd.f32 %v515, 1e-05
    %v521 = vrsqrt.pop %v520
    %v522 = vmul.f32 %v516, %v521
    %v523 = vmul.f32 %v517, %v521
    %v524 = vmul.f32 %v518, %v521
    %v525 = vmul.f32 %v519, %v521
    %v526 = vlaneseq
    %v527 = vshrl.u32 %v526, 7
    %v528 = vsub.s32 1, %v527
    %v529 = vrot.slane %v183, %v528
    %v530 = vlaneseq
    %v531 = vshrl.u32 %v530, 7
    %v532 = vsub.s32 1, %v531
    %v533 = vrot.slane %v184, %v532
    %v534 = vlaneseq
    %v535 = vshrl.u32 %v534, 7
    %v536 = vsub.s32 1, %v535
    %v537 = vrot.slane %v185, %v536
    %v538 = vlaneseq
    %v539 = vshrl.u32 %v538, 7
    %v540 = vsub.s32 1, %v539
    %v541 = vrot.slane %v186, %v540
    %v542 = vmul.f32 %v522, %v529
    %v543 = vmul.f32 %v523, %v533
    %v544 = vmul.f32 %v524, %v537
    %v545 = vmul.f32 %v525, %v541
    %v546 = vlaneseq
    %v547 = vshrl.u32 %v546, 7
    %v548 = vsub.s32 2, %v547
    %v549 = vrot.slane %v183, %v548
    %v550 = vlaneseq
    %v551 = vshrl.u32 %v550, 7
    %v552 = vsub.s32 2, %v551
    %v553 = vrot.slane %v184, %v552
    %v554 = vlaneseq
    %v555 = vshrl.u32 %v554, 7
    %v556 = vsub.s32 2, %v555
    %v557 = vrot.slane %v185, %v556
    %v558 = vlaneseq
    %v559 = vshrl.u32 %v558, 7
    %v560 = vsub.s32 2, %v559
    %v561 = vrot.slane %v186, %v560
    %v562 = vadd.f32 %v542, %v549
    %v563 = vadd.f32 %v543, %v553
    %v564 = vadd.f32 %v544, %v557
    %v565 = vadd.f32 %v545, %v561
    %566 = vst [vmem:[#allocation11] sm:$0xff] %v562
    %567 = vst [vmem:[#allocation11 + $0x8] sm:$0xff] %v563
    %568 = vst [vmem:[#allocation11 + $0x10] sm:$0xff] %v564
    %569 = vst [vmem:[#allocation11 + $0x18] sm:$0xff] %v565
    %v570 = vld [vmem:[#allocation5] sm:$0xff]
    %v571 = vld [vmem:[#allocation5 + $0x8] sm:$0xff]
    %v572 = vld [vmem:[#allocation5 + $0x10] sm:$0xff]
    %v573 = vld [vmem:[#allocation5 + $0x18] sm:$0xff]
    %v574 = vadd.f32 %v570, %v571
    %v575 = vadd.f32 %v574, %v572
    %v576 = vadd.f32 %v575, %v573
    %577 = vadd.xlane.f32.xlu0 %v576
    %v578 = vpop.xlane.xlu0 %577
    %v579 = vmul.f32 %v578, %v501
    %v580 = vmul.f32 %v570, %v570
    %v581 = vmul.f32 %v571, %v571
    %v582 = vmul.f32 %v572, %v572
    %v583 = vmul.f32 %v573, %v573
    %v584 = vadd.f32 %v580, %v581
    %v585 = vadd.f32 %v584, %v582
    %v586 = vadd.f32 %v585, %v583
    %587 = vadd.xlane.f32.xlu0 %v586
    %v588 = vpop.xlane.xlu0 %587
    %v589 = vmul.f32 %v588, %v501
    %v590 = vmul.f32 %v579, %v579
    %v591 = vsub.f32 %v589, %v590
    %v592 = vmax.f32 %v591, 0.0
    %v593 = vsub.f32 %v570, %v579
    %v594 = vsub.f32 %v571, %v579
    %v595 = vsub.f32 %v572, %v579
    %v596 = vsub.f32 %v573, %v579
    %v597 = vadd.f32 %v592, 1e-05
    %v598 = vrsqrt.pop %v597
    %v599 = vmul.f32 %v593, %v598
    %v600 = vmul.f32 %v594, %v598
    %v601 = vmul.f32 %v595, %v598
    %v602 = vmul.f32 %v596, %v598
    %v603 = vlaneseq
    %v604 = vshrl.u32 %v603, 7
    %v605 = vsub.s32 3, %v604
    %v606 = vrot.slane %v183, %v605
    %v607 = vlaneseq
    %v608 = vshrl.u32 %v607, 7
    %v609 = vsub.s32 3, %v608
    %v610 = vrot.slane %v184, %v609
    %v611 = vlaneseq
    %v612 = vshrl.u32 %v611, 7
    %v613 = vsub.s32 3, %v612
    %v614 = vrot.slane %v185, %v613
    %v615 = vlaneseq
    %v616 = vshrl.u32 %v615, 7
    %v617 = vsub.s32 3, %v616
    %v618 = vrot.slane %v186, %v617
    %v619 = vmul.f32 %v599, %v606
    %v620 = vmul.f32 %v600, %v610
    %v621 = vmul.f32 %v601, %v614
    %v622 = vmul.f32 %v602, %v618
    %v623 = vlaneseq
    %v624 = vshrl.u32 %v623, 7
    %v625 = vsub.s32 4, %v624
    %v626 = vrot.slane %v183, %v625
    %v627 = vlaneseq
    %v628 = vshrl.u32 %v627, 7
    %v629 = vsub.s32 4, %v628
    %v630 = vrot.slane %v184, %v629
    %v631 = vlaneseq
    %v632 = vshrl.u32 %v631, 7
    %v633 = vsub.s32 4, %v632
    %v634 = vrot.slane %v185, %v633
    %v635 = vlaneseq
    %v636 = vshrl.u32 %v635, 7
    %v637 = vsub.s32 4, %v636
    %v638 = vrot.slane %v186, %v637
    %v639 = vadd.f32 %v619, %v626
    %v640 = vadd.f32 %v620, %v630
    %v641 = vadd.f32 %v621, %v634
    %v642 = vadd.f32 %v622, %v638
    %643 = vst [vmem:[#allocation12] sm:$0xff] %v639
    %644 = vst [vmem:[#allocation12 + $0x8] sm:$0xff] %v640
    %645 = vst [vmem:[#allocation12 + $0x10] sm:$0xff] %v641
    %646 = vst [vmem:[#allocation12 + $0x18] sm:$0xff] %v642
    // Predicated region
    $region42: #{tpu_custom_call.1} parent=1 // pred_check
      _
    $region43: #{tpu_custom_call.1} parent=1 // pred_check_branch
      %648 = sbr.rel (0) target = $region45
    $region44: #{tpu_custom_call.1} parent=1 // pred_region
      %s650 = ssub.s32 512, 512
      %651 = vsyncadd [#allocation4], %s650
      %s653 = sshll.u32 [#allocation11], 4
      %s654 = int_to_ptr.vmem [resolvable:$true] %s653
      %656 = dma.vmem_to_hbm [thread:$0]  %s654, 512, %s5, [#allocation4]
    $region45: #{tpu_custom_call.1} parent=1 // pred_fallthru
      _
    // Predicated region
    $region46: #{tpu_custom_call.1} parent=1 // pred_check
      _
    $region47: #{tpu_custom_call.1} parent=1 // pred_check_branch
      %658 = sbr.rel (0) target = $region49
    $region48: #{tpu_custom_call.1} parent=1 // pred_region
      %s660 = ssub.s32 512, 512
      %661 = vsyncadd [#allocation13], %s660
      %s663 = sshll.u32 [#allocation12], 4
      %s664 = int_to_ptr.vmem [resolvable:$true] %s663
      %666 = dma.vmem_to_hbm [thread:$0]  %s664, 512, %s6, [#allocation13]
    $region49: #{tpu_custom_call.1} parent=1 // pred_fallthru
      _
    // Predicated region
    $region50: #{tpu_custom_call.1} parent=1 // pred_check
      _
    $region51: #{tpu_custom_call.1} parent=1 // pred_check_branch
      %668 = sbr.rel (0) target = $region53
    $region52: #{tpu_custom_call.1} parent=1 // pred_region
      %669 = dma.done [#allocation4], 512
    $region53: #{tpu_custom_call.1} parent=1 // pred_fallthru
      _
    // Predicated region
    $region54: #{tpu_custom_call.1} parent=1 // pred_check
      _
    $region55: #{tpu_custom_call.1} parent=1 // pred_check_branch
      %671 = sbr.rel (0) target = $region57
    $region56: #{tpu_custom_call.1} parent=1 // pred_region
      %672 = dma.done [#allocation13], 512
    $region57: #{tpu_custom_call.1} parent=1 // pred_fallthru
      _
    %673 = vsyncpa [#allocation3], 1
    %674 = vsyncpa [#allocation6], 1
    %675 = vsyncpa [#allocation9], 1
    %676 = vsyncpa [#allocation4], 1
    %677 = vsyncpa [#allocation13], 1

</llo_original>
